<compile_context>
chip_gen: v7x
topology: tpu7x:2x2x1
jax: 0.10.0
libtpu: 0.0.40
codegen_flags: <defaults>
</compile_context>

<pallas_src>
import math

import jax
import jax.numpy as jnp
from jax.experimental import pallas as pl
from jax.experimental.pallas import tpu as pltpu


def _pe_add_kernel(x_ref, pe_ref, o_ref):
    # x_ref: (bB, tS, D_eff) tile; pe_ref: (tS, D_eff) table window.
    # Broadcast-add over the folded batch dim; explicit cast on the store.
    o_ref[...] = (x_ref[...] + pe_ref[...]).astype(o_ref.dtype)


def make_positional_encoding_table(embedding_dim: int, max_len: int = 5000,
                                   dtype=jnp.float32):
    """Deterministic sin/cos table, same math as the PyTorch __init__.

    Build it directly in the dtype you will run with (e.g. bf16) so the
    forward pass never pays a per-call astype over the table.
    """
    position = jnp.arange(0, max_len, dtype=jnp.float32)[:, None]            # (L, 1)
    div_term = jnp.exp(
        jnp.arange(0, embedding_dim, 2, dtype=jnp.float32)
        * (-math.log(10000.0) / embedding_dim)
    )                                                                         # (ceil(D/2),)
    pe = jnp.zeros((max_len, embedding_dim), dtype=jnp.float32)
    pe = pe.at[:, 0::2].set(jnp.sin(position * div_term))
    # Guard odd embedding_dim: the cos half has floor(D/2) columns.
    pe = pe.at[:, 1::2].set(jnp.cos(position * div_term[: embedding_dim // 2]))
    return pe.astype(dtype)                                                   # (L, D)


def _chip_defaults():
    """Per-generation (x-tile byte budget, vmem_limit_bytes | None, #TCs)."""
    try:
        kind = jax.devices()[0].device_kind.lower()
    except Exception:
        kind = ""
    if "v7" in kind:
        # 3.2 TB/s HBM -> a 2 MiB step is only ~1.3us of DMA, so the ~0.35us
        # per-grid-step overhead would eat 20+%. Use 6 MiB tiles; resident set
        # (~4 x-tiles + 2 pe tiles ~ 36 MiB) needs an explicit scoped-VMEM
        # bump but stays well under the 64 MiB physical VMEM.
        return 6 << 20, 48 << 20, 2
    if "v6" in kind:
        # 32 MiB default scoped VMEM holds 4 MiB tiles double-buffered.
        return 4 << 20, None, 1
    if "v5p" in kind or "v4" in kind:
        return 2 << 20, None, 2
    if "v5" in kind:
        # v5e default scoped VMEM is only 16 MiB -- do not inherit bigger tiles.
        return 2 << 20, None, 1
    return 2 << 20, None, 1


def _sublane(dtype):
    # Native sublane packing: 8 rows for 32-bit, 16 for bf16, 32 for int8/fp8.
    return max(8, 32 // jnp.dtype(dtype).itemsize)


def _largest_aligned_divisor(n, align, upper):
    """Largest divisor of n that is a multiple of `align` and <= upper (or None)."""
    d = (min(n, upper) // align) * align
    while d >= align:
        if n % d == 0:
            return d
        d -= align
    return None


def positional_encoding_forward(x, pe_table, *, target_tile_bytes=None):
    """x: (B, S, D); pe_table: (max_len, D), max_len >= S. Returns x + pe[:S]."""
    B, S, D = x.shape
    assert pe_table.shape[0] >= S, "pe table shorter than sequence length"
    assert pe_table.shape[1] == D

    # Prefer building the table in x.dtype up front (see
    # make_positional_encoding_table) so this is a trace-time no-op rather
    # than a per-call read+write pass over the table.
    if pe_table.dtype != x.dtype:
        pe_table = pe_table.astype(x.dtype)

    budget, vmem_limit, num_tc = _chip_defaults()
    if target_tile_bytes is not None:
        budget = int(target_tile_bytes)

    itemsize = jnp.dtype(x.dtype).itemsize
    sub = _sublane(x.dtype)

    # Lane-dense guard: if D is not a multiple of 128, fold k sequence rows
    # into the lane axis (last block dim becomes k*D, a multiple of 128) so
    # stores stay unmasked. Elementwise add is reshape-invariant.
    k = 128 // math.gcd(D, 128)
    folded = (k > 1) and (S % k == 0)
    if folded:
        x_in = x.reshape(B, S // k, k * D)
        pe_in = pe_table[:S].reshape(S // k, k * D)
        S_eff, D_eff = S // k, k * D
    else:
        x_in = x
        pe_in = pe_table  # full table, windowed by the BlockSpec (no host slice)
        S_eff, D_eff = S, D

    row_bytes = D_eff * itemsize
    rows_budget = max(1, budget // row_bytes)

    # Sequence tile: full extent when it fits, else the largest sublane-aligned
    # divisor of S_eff within the byte budget (every step unmasked & even);
    # fall back to a budget-rounded multiple of the native sublane packing.
    if S_eff <= rows_budget:
        tS = S_eff
    else:
        tS = _largest_aligned_divisor(S_eff, sub, rows_budget)
        if tS is None:
            tS = max(sub, (rows_budget // sub) * sub)

    # Fold batch rows into the block while the x tile stays within the budget
    # (amortizes per-grid-step overhead); prefer a fold that divides B.
    bB = int(max(1, min(B, budget // max(1, tS * row_bytes))))
    while bB > 1 and B % bB != 0:
        bB -= 1

    num_s = pl.cdiv(S_eff, tS)
    num_b = pl.cdiv(B, bB)

    # 2-TensorCore chips (v7x/v5p): guarantee >= 2 parallel grid steps so both
    # cores get work instead of leaving half the chip idle.
    if num_tc >= 2 and num_s * num_b < num_tc:
        if B >= 2:
            bB = pl.cdiv(B, num_tc)
            num_b = pl.cdiv(B, bB)
        else:
            split = _largest_aligned_divisor(S_eff, sub, S_eff - 1)
            if split is None:
                cand = ((pl.cdiv(S_eff, num_tc) + sub - 1) // sub) * sub
                if cand < S_eff:
                    split = cand
            if split is not None:
                tS = split
                num_s = pl.cdiv(S_eff, tS)

    # Batch innermost: the pe block index (s, 0) is constant across the inner
    # b steps, so Pallas keeps the pe tile resident instead of re-fetching it.
    grid = (num_s, num_b)

    compiler_kwargs = dict(
        # Both axes independent; "parallel" lets Mosaic shard grid steps
        # across a 2-TC chip (no-op on v5e/v6e).
        dimension_semantics=("parallel", "parallel"),
    )
    if vmem_limit is not None:
        compiler_kwargs["vmem_limit_bytes"] = int(vmem_limit)

    out = pl.pallas_call(
        _pe_add_kernel,
        out_shape=jax.ShapeDtypeStruct((B, S_eff, D_eff), x.dtype),
        grid_spec=pltpu.PrefetchScalarGridSpec(
            num_scalar_prefetch=0,
            grid=grid,
            in_specs=[
                pl.BlockSpec((bB, tS, D_eff), lambda s, b: (b, s, 0)),
                pl.BlockSpec((tS, D_eff), lambda s, b: (s, 0)),
            ],
            out_specs=pl.BlockSpec((bB, tS, D_eff), lambda s, b: (b, s, 0)),
        ),
        # In-place add: reuse x's HBM buffer for the output (pair with
        # donate_argnums at the jit boundary to avoid a defensive copy).
        input_output_aliases={0: 0},
        compiler_params=pltpu.CompilerParams(**compiler_kwargs),
    )(x_in, pe_in)

    return out.reshape(B, S, D) if folded else out


if __name__ == "__main__":
    embedding_dim = 128
    max_len = 64          # >= seq; same formula as the module's max_len=5000
    batch = 2
    seq = 8

    key = jax.random.PRNGKey(0)
    x = jax.random.normal(key, (batch, seq, embedding_dim), dtype=jnp.float32)

    # Build the table once, already in the run dtype (no per-call astype).
    pe_table = make_positional_encoding_table(embedding_dim, max_len,
                                              dtype=x.dtype)

    # Reference computed BEFORE the kernel call because x is donated below.
    ref = x + pe_table[None, :seq, :]

    fwd = jax.jit(positional_encoding_forward, donate_argnums=(0,))
    out = jax.block_until_ready(fwd(x, pe_table))

    assert out.shape == (batch, seq, embedding_dim)
    assert jnp.allclose(out, ref, atol=1e-6), "mismatch vs reference"

    print("KERNEL_OK")
</pallas_src>

<mosaic_0001>
module attributes {stable_mosaic.version = 11 : i64} {
  func.func @_pe_add_kernel(%arg0: i32, %arg1: i32, %arg2: memref<2x8x128xf32, #tpu.memory_space<vmem>>, %arg3: memref<8x128xf32, #tpu.memory_space<vmem>>, %arg4: memref<2x8x128xf32, #tpu.memory_space<vmem>>) attributes {dimension_semantics = [#tpu.dimension_semantics<parallel>, #tpu.dimension_semantics<parallel>], iteration_bounds = array<i64: 1, 1>, scalar_prefetch = 0 : i64, scratch_operands = 0 : i64, tpu.core_type = #tpu.core_type<tc>, window_params = [{transform_indices = @transform_0, window_bounds = array<i64: 2, 8, 128>}, {transform_indices = @transform_1, window_bounds = array<i64: 8, 128>}, {transform_indices = @transform_2, window_bounds = array<i64: 2, 8, 128>}]} {
    %c0 = arith.constant 0 : index
    %c0_0 = arith.constant 0 : index
    %c0_1 = arith.constant 0 : index
    %0 = vector.load %arg2[%c0, %c0_0, %c0_1] : memref<2x8x128xf32, #tpu.memory_space<vmem>>, vector<2x8x128xf32>
    %c0_2 = arith.constant 0 : index
    %c0_3 = arith.constant 0 : index
    %1 = vector.load %arg3[%c0_2, %c0_3] : memref<8x128xf32, #tpu.memory_space<vmem>>, vector<8x128xf32>
    %2 = vector.shape_cast %1 : vector<8x128xf32> to vector<1x8x128xf32>
    %3 = vector.broadcast %2 : vector<1x8x128xf32> to vector<2x8x128xf32>
    %4 = arith.addf %0, %3 : vector<2x8x128xf32>
    %c0_4 = arith.constant 0 : index
    %c0_5 = arith.constant 0 : index
    %c0_6 = arith.constant 0 : index
    %5 = vector.load %arg4[%c0_4, %c0_5, %c0_6] : memref<2x8x128xf32, #tpu.memory_space<vmem>>, vector<2x8x128xf32>
    tpu.vector_store %arg4[%c0_4, %c0_5, %c0_6], %4 {strides = array<i32>} : memref<2x8x128xf32, #tpu.memory_space<vmem>>, vector<2x8x128xf32>,
    return
  }
  func.func @transform_0(%arg0: i32, %arg1: i32) -> (i32, i32, i32) {
    %c0_i32 = arith.constant 0 : i32
    %c0_i32_0 = arith.constant 0 : i32
    return %arg1, %arg0, %c0_i32 : i32, i32, i32
  }
  func.func @transform_1(%arg0: i32, %arg1: i32) -> (i32, i32) {
    %c0_i32 = arith.constant 0 : i32
    %c0_i32_0 = arith.constant 0 : i32
    return %arg0, %c0_i32 : i32, i32
  }
  func.func @transform_2(%arg0: i32, %arg1: i32) -> (i32, i32, i32) {
    %c0_i32 = arith.constant 0 : i32
    %c0_i32_0 = arith.constant 0 : i32
    return %arg1, %arg0, %c0_i32 : i32, i32, i32
  }
}

</mosaic_0001>

<llo_original>
// kernel: positional_encoding_forward.1
$region0: #{positional_encoding_forward.1}
  #allocation0 [shape = 'u32[]', space=smem, size = 0x4, offset = 0x4, fixed_abs, tag = 'smem constant byte address 0x4 - core index']
  #allocation1 [shape = 'u32[144,128]{1,0:T(1,128)}', space=vmem, size = 0x12000, scoped, tag = 'internal scratch']
  %s0 = inlined_call_operand.hbm [shape: f32[2,8,128], index: 0, kind: input, shape index: {}, may-alias: {0,2}]
  %s1 = inlined_call_operand.hbm [shape: f32[64,128], index: 1, kind: input, shape index: {}]
  %s2 = inlined_call_operand.hbm [shape: f32[2,8,128], index: 2, kind: output, shape index: {}, may-alias: {0,2}]
  %s3 = sld [smem:[#allocation0]]
  $region26: #{positional_encoding_forward.1} parent=0
    _
  %s5 = ssub.s32 1, %s3
  %s6 = scalar_select 0, %s5, %s3
  $region1: #{positional_encoding_forward.1} parent=0
    #allocation2 [shape = 'u8[8192]{0}', space=vmem, size = 0x2000, scoped, tag = 'input window, operand 0, single buffered']
    #allocation3 [shape = 's32[1]{0}', space=sflag, size = 0x4, scoped, tag = 'scoped memory for positional_encoding_forward.1']
    #allocation4 [shape = 's32[1]{0}', space=sflag, size = 0x4, scoped, tag = 'scoped memory for positional_encoding_forward.1']
    #allocation5 [shape = 'u8[4096]{0}', space=vmem, size = 0x1000, scoped, tag = 'input window, operand 1, single buffered']
    #allocation6 [shape = 's32[1]{0}', space=sflag, size = 0x4, scoped, tag = 'scoped memory for positional_encoding_forward.1']
    #allocation7 [shape = 'u8[8192]{0}', space=vmem, size = 0x2000, scoped, tag = 'output window, operand 0, single buffered']
    %7 = vsyncpa [#allocation3], 0
    %8 = vsyncpa [#allocation6], 0
    %9 = vsyncpa [#allocation4], 0
    // Predicated region
    $region2: #{positional_encoding_forward.1} parent=1 // pred_check
      _
    $region3: #{positional_encoding_forward.1} parent=1 // pred_check_branch
      %11 = sbr.rel (0) target = $region5
    $region4: #{positional_encoding_forward.1} parent=1 // pred_region
      %s13 = ssub.s32 256, 256
      %14 = vsyncadd [#allocation3], %s13
      %s15 = sshll.u32 [#allocation2], 4
      %s16 = int_to_ptr.vmem [resolvable:$true] %s15
      %21 = dma.hbm_to_vmem [thread:$0]  %s0, 256, %s16, [#allocation3], 128, 128, 8
    $region5: #{positional_encoding_forward.1} parent=1 // pred_fallthru
      _
    // Predicated region
    $region6: #{positional_encoding_forward.1} parent=1 // pred_check
      _
    $region7: #{positional_encoding_forward.1} parent=1 // pred_check_branch
      %23 = sbr.rel (0) target = $region9
    $region8: #{positional_encoding_forward.1} parent=1 // pred_region
      %s25 = ssub.s32 128, 128
      %26 = vsyncadd [#allocation6], %s25
      %s28 = sshll.u32 [#allocation5], 4
      %s29 = int_to_ptr.vmem [resolvable:$true] %s28
      %31 = dma.hbm_to_vmem [thread:$0]  %s1, 128, %s29, [#allocation6]
    $region9: #{positional_encoding_forward.1} parent=1 // pred_fallthru
      _
    // Predicated region
    $region10: #{positional_encoding_forward.1} parent=1 // pred_check
      _
    $region11: #{positional_encoding_forward.1} parent=1 // pred_check_branch
      %33 = sbr.rel (0) target = $region13
    $region12: #{positional_encoding_forward.1} parent=1 // pred_region
      %34 = dma.done [#allocation3], 256
    $region13: #{positional_encoding_forward.1} parent=1 // pred_fallthru
      _
    // Predicated region
    $region14: #{positional_encoding_forward.1} parent=1 // pred_check
      _
    $region15: #{positional_encoding_forward.1} parent=1 // pred_check_branch
      %36 = sbr.rel (0) target = $region17
    $region16: #{positional_encoding_forward.1} parent=1 // pred_region
      %37 = dma.done [#allocation6], 128
    $region17: #{positional_encoding_forward.1} parent=1 // pred_fallthru
      _
    %v38 = vld [vmem:[#allocation2] sm:$0xff]
    %v39 = vld [vmem:[#allocation2 + $0x8] sm:$0xff]
    %v40 = vld [vmem:[#allocation5] sm:$0xff]
    %v41 = vadd.f32 %v38, %v40
    %v42 = vadd.f32 %v39, %v40
    %43 = vst [vmem:[#allocation7] sm:$0xff] %v41
    %44 = vst [vmem:[#allocation7 + $0x8] sm:$0xff] %v42
    // Predicated region
    $region18: #{positional_encoding_forward.1} parent=1 // pred_check
      _
    $region19: #{positional_encoding_forward.1} parent=1 // pred_check_branch
      %46 = sbr.rel (0) target = $region21
    $region20: #{positional_encoding_forward.1} parent=1 // pred_region
      %s48 = ssub.s32 256, 256
      %49 = vsyncadd [#allocation4], %s48
      %s50 = sshll.u32 [#allocation7], 4
      %s51 = int_to_ptr.vmem [resolvable:$true] %s50
      %56 = dma.vmem_to_hbm [thread:$0]  %s51, 256, %s2, [#allocation4], 128, 128, 8
    $region21: #{positional_encoding_forward.1} parent=1 // pred_fallthru
      _
    // Predicated region
    $region22: #{positional_encoding_forward.1} parent=1 // pred_check
      _
    $region23: #{positional_encoding_forward.1} parent=1 // pred_check_branch
      %58 = sbr.rel (0) target = $region25
    $region24: #{positional_encoding_forward.1} parent=1 // pred_region
      %59 = dma.done [#allocation4], 256
    $region25: #{positional_encoding_forward.1} parent=1 // pred_fallthru
      _
    %60 = vsyncpa [#allocation3], 1
    %61 = vsyncpa [#allocation6], 1
    %62 = vsyncpa [#allocation4], 1

</llo_original>
